<compile_context>
chip_gen: v7x
topology: tpu7x:2x2x1
jax: 0.10.0
libtpu: 0.0.40
codegen_flags: <defaults>
</compile_context>

<pallas_src>
import functools
import math

import jax
import jax.numpy as jnp
from jax import lax
from jax.experimental import pallas as pl
from jax.experimental.pallas import tpu as pltpu


def _round_up(x, m):
    return ((x + m - 1) // m) * m


# --------------------------------------------------------------------------
# Fast path: table resident in VMEM, one-hot MXU gather.
# --------------------------------------------------------------------------
def _onehot_embed_kernel(ids_ref, table_ref, out_ref, *, vocab_size, scale):
    """ids_ref (TB,1) i32 VMEM; table_ref (V,Dp) VMEM (resident); out (TB,Dp)."""
    ids = ids_ref[...]                                               # (TB, 1)
    tb = ids.shape[0]
    iota = lax.broadcasted_iota(jnp.int32, (tb, vocab_size), 1)      # (TB, V)
    one_hot = (iota == ids).astype(table_ref.dtype)                  # (TB, V)
    acc = jnp.dot(one_hot, table_ref[...],
                  preferred_element_type=jnp.float32)                # (TB, Dp)
    out_ref[...] = (acc * scale).astype(out_ref.dtype)


# --------------------------------------------------------------------------
# General path: table in HBM, manual double-buffered row gather.
# --------------------------------------------------------------------------
def _gather_embed_kernel(ids_ref, table_hbm, out_ref, buf, sem, *,
                         block_tokens, scale):
    """One grid step: DMA-gather `block_tokens` rows, scale in f32, store.

    ids_ref:   (N_pad,) int32 in SMEM (scalar-prefetched token ids)
    table_hbm: (V, Dp) embedding table in HBM (memory_space=pl.ANY)
    out_ref:   (TB, Dp) output tile in VMEM
    buf:       (2*TB, Dp) VMEM scratch -- two TB-row slots (double buffer)
    sem:       (2,) DMA semaphores, one per slot
    """
    o = pl.program_id(0)
    i = pl.program_id(1)
    n_in = pl.num_programs(1)
    blk = o * n_in + i
    slot = i % 2

    def issue_block(block_idx, slot_idx):
        base = block_idx * block_tokens
        slot_base = slot_idx * block_tokens

        def issue_one(t, carry):
            tok = ids_ref[base + t]
            pltpu.make_async_copy(
                table_hbm.at[pl.ds(tok, 1), :],
                buf.at[pl.ds(slot_base + t, 1), :],
                sem.at[slot_idx],
            ).start()
            return carry

        # Unrolled so the LLO scheduler can co-issue the SMEM id load,
        # address math and descriptor push of adjacent rows.
        lax.fori_loop(0, block_tokens, issue_one, 0, unroll=8)

    # Prime the pipeline on the first inner step of each core's range.
    @pl.when(i == 0)
    def _():
        issue_block(blk, slot)

    # Prefetch the next block into the other slot BEFORE waiting on this one
    # (keeps the DMA queue full and keeps SMEM reads ahead of the wait).
    @pl.when(i + 1 < n_in)
    def _():
        issue_block(blk + 1, 1 - slot)

    # Single size-based wait per slot: every per-row DMA signals the slot's
    # semaphore by its byte count, and block_tokens rows of Dp elements sum to
    # exactly one (TB, Dp) slot, so one wait descriptor covering the whole
    # slot accounts for all of them.  NOTE: this relies on all row copies
    # being identically sized (no coalescing / padded last row).
    slot_base = pl.multiple_of(slot * block_tokens, block_tokens)
    slot_view = buf.at[pl.ds(slot_base, block_tokens), :]
    pltpu.make_async_copy(slot_view, slot_view, sem.at[slot]).wait()

    rows = buf[pl.ds(slot_base, block_tokens), :]
    out_ref[...] = (rows.astype(jnp.float32) * scale).astype(out_ref.dtype)


# --------------------------------------------------------------------------
# Wrapper
# --------------------------------------------------------------------------
def input_embedding(ids, table, *, block_tokens=None, out_dtype=None):
    """Embedding lookup with sqrt(D) scaling: returns table[ids] * sqrt(D).

    ids:   (B, S) integer token ids
    table: (V, D) float embedding table
    out_dtype: optional output dtype (e.g. jnp.bfloat16 to halve writeback);
               defaults to table.dtype (matches the PyTorch module).
    """
    B, S = ids.shape
    V, D = table.shape
    N = B * S
    scale = float(D) ** 0.5
    out_dtype = jnp.dtype(out_dtype) if out_dtype is not None else table.dtype

    # Pad D to a lane multiple so every output store is an unmasked vst.
    D_pad = _round_up(D, 128)
    table_p = table if D_pad == D else jnp.pad(table, ((0, 0), (0, D_pad - D)))
    # TODO(synk): padding copies the table in HBM; for huge non-128-multiple D
    # a pre-padded parameter layout would avoid the per-call copy.

    t_item = table.dtype.itemsize
    o_item = out_dtype.itemsize
    sub = max(8, 32 // t_item, 32 // o_item)   # packed-sublane multiple

    try:
        vmem_cap = int(pltpu.get_tpu_info().vmem_capacity_bytes)
    except Exception:  # pragma: no cover - conservative fallback
        vmem_cap = 64 << 20
    vmem_cap_budget = (vmem_cap * 3) // 4      # leave headroom (v7x: 64 MiB total)

    table_bytes = V * D_pad * t_item
    use_onehot = (V <= 4096) and (table_bytes <= min(8 << 20, vmem_cap // 8))

    if block_tokens is None:
        block_tokens = 256 if use_onehot else 128
    tb = max(sub, (min(block_tokens, _round_up(N, sub)) // sub) * sub)

    # ids live as int32; clamp so a bad id can't address out of bounds.
    # TODO(synk): PyTorch nn.Embedding raises on out-of-range ids; here they
    # are clamped to [0, V-1] instead of erroring.
    ids_flat = jnp.clip(ids.reshape(-1).astype(jnp.int32), 0, V - 1)

    if use_onehot:
        # ---------------- resident-table / one-hot MXU path ----------------
        n_pad = _round_up(N, tb)
        if n_pad != N:
            ids_flat = jnp.pad(ids_flat, (0, n_pad - N))
        ids_col = ids_flat.reshape(n_pad, 1)

        vmem_needed = (2 * table_bytes
                       + 4 * tb * D_pad * max(t_item, o_item)
                       + tb * V * 4 + (8 << 20))
        vmem_limit = min(max(vmem_needed, 32 << 20), vmem_cap_budget)

        cost = pl.CostEstimate(
            flops=2 * n_pad * V * D_pad + n_pad * D_pad,
            transcendentals=0,
            bytes_accessed=table_bytes + n_pad * 4 + n_pad * D_pad * o_item)

        out_flat = pl.pallas_call(
            functools.partial(_onehot_embed_kernel, vocab_size=V, scale=scale),
            out_shape=jax.ShapeDtypeStruct((n_pad, D_pad), out_dtype),
            grid_spec=pltpu.PrefetchScalarGridSpec(
                num_scalar_prefetch=0,
                grid=(n_pad // tb,),
                in_specs=[
                    pl.BlockSpec((tb, 1), lambda i: (i, 0)),        # ids
                    pl.BlockSpec((V, D_pad), lambda i: (0, 0)),     # table (resident)
                ],
                out_specs=pl.BlockSpec((tb, D_pad), lambda i: (i, 0)),
            ),
            compiler_params=pltpu.CompilerParams(
                dimension_semantics=("parallel",),
                vmem_limit_bytes=vmem_limit),
            cost_estimate=cost,
        )(ids_col, table_p)
    else:
        # -------------------- HBM row-gather path ---------------------------
        n_blocks0 = -(-N // tb)
        n_outer = 2 if n_blocks0 >= 4 else 1       # lets v7x use both TCs
        n_pad = _round_up(N, tb * n_outer)
        if n_pad != N:
            ids_flat = jnp.pad(ids_flat, (0, n_pad - N))
        n_inner = (n_pad // tb) // n_outer

        vmem_needed = (2 * tb * D_pad * t_item      # gather double buffer
                       + 2 * tb * D_pad * o_item    # pipelined output tiles
                       + (8 << 20))
        vmem_limit = min(max(vmem_needed, 32 << 20), vmem_cap_budget)

        cost = pl.CostEstimate(
            flops=n_pad * D_pad,
            transcendentals=0,
            bytes_accessed=2 * n_pad * D_pad * t_item + n_pad * 4)

        out_flat = pl.pallas_call(
            functools.partial(_gather_embed_kernel,
                              block_tokens=tb, scale=scale),
            out_shape=jax.ShapeDtypeStruct((n_pad, D_pad), out_dtype),
            grid_spec=pltpu.PrefetchScalarGridSpec(
                num_scalar_prefetch=1,                     # ids -> SMEM
                grid=(n_outer, n_inner),
                in_specs=[pl.BlockSpec(memory_space=pl.ANY)],   # table in HBM
                out_specs=pl.BlockSpec(
                    (tb, D_pad), lambda o, i, ids: (o * n_inner + i, 0)),
                scratch_shapes=[
                    pltpu.VMEM((2 * tb, D_pad), table.dtype),
                    pltpu.SemaphoreType.DMA((2,)),
                ],
            ),
            compiler_params=pltpu.CompilerParams(
                # Outer axis is independent per token range -> parallel
                # (megacore); inner axis carries double-buffer state ->
                # arbitrary.
                dimension_semantics=("parallel", "arbitrary"),
                vmem_limit_bytes=vmem_limit),
            cost_estimate=cost,
        )(ids_flat, table_p)

    out = out_flat[:N]
    if D_pad != D:
        out = out[:, :D]
    return out.reshape(B, S, D)


if __name__ == "__main__":
    key = jax.random.PRNGKey(0)
    k_emb, k_ids1, k_ids2, k_emb2, k_ids3 = jax.random.split(key, 5)

    # ---- small vocab: exercises the resident-table / one-hot MXU fast path.
    vocab_size, dims = 128, 128
    emb_table = jax.random.normal(k_emb, (vocab_size, dims), dtype=jnp.float32)

    ids1 = jax.random.randint(k_ids1, (2, 8), 0, vocab_size, dtype=jnp.int32)
    y1 = jax.block_until_ready(input_embedding(ids1, emb_table))
    ref1 = jnp.take(emb_table, ids1, axis=0) * math.sqrt(dims)
    assert y1.shape == (2, 8, dims)
    assert jnp.allclose(y1, ref1, atol=1e-5, rtol=1e-5)

    ids2 = jax.random.randint(k_ids2, (2, 9), 0, vocab_size, dtype=jnp.int32)  # padded tail
    y2 = jax.block_until_ready(input_embedding(ids2, emb_table))
    ref2 = jnp.take(emb_table, ids2, axis=0) * math.sqrt(dims)
    assert y2.shape == (2, 9, dims)
    assert jnp.allclose(y2, ref2, atol=1e-5, rtol=1e-5)

    # ---- larger vocab: exercises the HBM double-buffered gather path
    #      (2-D grid, unrolled issue loop, single per-slot wait).
    vocab_big = 5000
    emb_big = jax.random.normal(k_emb2, (vocab_big, dims), dtype=jnp.float32)
    ids3 = jax.random.randint(k_ids3, (4, 140), 0, vocab_big, dtype=jnp.int32)
    y3 = jax.block_until_ready(input_embedding(ids3, emb_big))
    ref3 = jnp.take(emb_big, ids3, axis=0) * math.sqrt(dims)
    assert y3.shape == (4, 140, dims)
    assert jnp.allclose(y3, ref3, atol=1e-5, rtol=1e-5)

    print("KERNEL_OK")
</pallas_src>

<mosaic_0001>
module attributes {stable_mosaic.version = 11 : i64} {
  func.func @_onehot_embed_kernel(%arg0: i32, %arg1: memref<16x1xi32, #tpu.memory_space<vmem>>, %arg2: memref<128x128xf32, #tpu.memory_space<vmem>>, %arg3: memref<16x128xf32, #tpu.memory_space<vmem>>) attributes {dimension_semantics = [#tpu.dimension_semantics<parallel>], iteration_bounds = array<i64: 1>, scalar_prefetch = 0 : i64, scratch_operands = 0 : i64, tpu.core_type = #tpu.core_type<tc>, window_params = [{transform_indices = @transform_0, window_bounds = array<i64: 16, 1>}, {pipeline_mode = #tpu.pipeline_mode<synchronous>, transform_indices = @transform_1, window_bounds = array<i64: 128, 128>}, {transform_indices = @transform_2, window_bounds = array<i64: 16, 128>}]} {
    %c0 = arith.constant 0 : index
    %c0_0 = arith.constant 0 : index
    %0 = vector.load %arg1[%c0, %c0_0] : memref<16x1xi32, #tpu.memory_space<vmem>>, vector<16x1xi32>
    %1 = tpu.iota {dimensions = array<i32: 1>} : vector<16x128xi32>
    %2 = vector.broadcast %0 : vector<16x1xi32> to vector<16x128xi32>
    %3 = arith.cmpi eq, %1, %2 : vector<16x128xi32>
    %4 = arith.extui %3 : vector<16x128xi1> to vector<16x128xi32>
    %5 = arith.sitofp %4 : vector<16x128xi32> to vector<16x128xf32>
    %c0_1 = arith.constant 0 : index
    %c0_2 = arith.constant 0 : index
    %6 = vector.load %arg2[%c0_1, %c0_2] : memref<128x128xf32, #tpu.memory_space<vmem>>, vector<128x128xf32>
    %cst = arith.constant dense<0.000000e+00> : vector<16x128xf32>
    %7 = tpu.matmul %5, %6, %cst {dimension_numbers = #tpu.dot_dimension_numbers<[1], [0], [0], [1], [0, 0, 1, 1], [], []>} : vector<16x128xf32>, vector<128x128xf32>, vector<16x128xf32> -> vector<16x128xf32>
    %cst_3 = arith.constant 11.3137083 : f32
    %8 = vector.broadcast %cst_3 : f32 to vector<16x128xf32>
    %9 = arith.mulf %7, %8 : vector<16x128xf32>
    %c0_4 = arith.constant 0 : index
    %c0_5 = arith.constant 0 : index
    %10 = vector.load %arg3[%c0_4, %c0_5] : memref<16x128xf32, #tpu.memory_space<vmem>>, vector<16x128xf32>
    tpu.vector_store %arg3[%c0_4, %c0_5], %9 {strides = array<i32>} : memref<16x128xf32, #tpu.memory_space<vmem>>, vector<16x128xf32>,
    return
  }
  func.func @transform_0(%arg0: i32) -> (i32, i32) {
    %c0_i32 = arith.constant 0 : i32
    %c0_i32_0 = arith.constant 0 : i32
    return %arg0, %c0_i32 : i32, i32
  }
  func.func @transform_1(%arg0: i32) -> (i32, i32) {
    %c0_i32 = arith.constant 0 : i32
    %c0_i32_0 = arith.constant 0 : i32
    %c0_i32_1 = arith.constant 0 : i32
    return %c0_i32, %c0_i32_0 : i32, i32
  }
  func.func @transform_2(%arg0: i32) -> (i32, i32) {
    %c0_i32 = arith.constant 0 : i32
    %c0_i32_0 = arith.constant 0 : i32
    return %arg0, %c0_i32 : i32, i32
  }
}

</mosaic_0001>

<llo_original>
// kernel: tpu_custom_call.1
$region0: #{tpu_custom_call.1}
  #allocation0 [shape = 'u32[]', space=smem, size = 0x4, offset = 0x4, fixed_abs, tag = 'smem constant byte address 0x4 - core index']
  #allocation1 [shape = 'u32[144,128]{1,0:T(1,128)}', space=vmem, size = 0x12000, scoped, tag = 'internal scratch']
  %s0 = inlined_call_operand.vmem [shape: s32[16,1], index: 0, kind: input, shape index: {}]
  %s1 = inlined_call_operand.hbm [shape: f32[128,128], index: 1, kind: input, shape index: {}]
  %s2 = inlined_call_operand.hbm [shape: f32[16,128], index: 2, kind: output, shape index: {}]
  %s3 = sld [smem:[#allocation0]]
  $region22: #{tpu_custom_call.1} parent=0
    _
  %s5 = ssub.s32 1, %s3
  %s6 = scalar_select 0, %s5, %s3
  $region1: #{tpu_custom_call.1} parent=0
    #allocation2 [shape = 'u8[65536]{0}', space=vmem, size = 0x10000, scoped, tag = 'input window, operand 1, single buffered']
    #allocation3 [shape = 's32[1]{0}', space=sflag, size = 0x4, scoped, tag = 'scoped memory for tpu_custom_call.1']
    #allocation4 [shape = 's32[1]{0}', space=sflag, size = 0x4, scoped, tag = 'scoped memory for tpu_custom_call.1']
    #allocation5 [shape = 'u8[8192]{0}', space=vmem, size = 0x2000, scoped, tag = 'output window, operand 0, single buffered']
    %7 = vsyncpa [#allocation3], 0
    %8 = vsyncpa [#allocation4], 0
    // Predicated region
    $region2: #{tpu_custom_call.1} parent=1 // pred_check
      _
    $region3: #{tpu_custom_call.1} parent=1 // pred_check_branch
      %10 = sbr.rel (0) target = $region5
    $region4: #{tpu_custom_call.1} parent=1 // pred_region
      _
    $region5: #{tpu_custom_call.1} parent=1 // pred_fallthru
      _
    // Predicated region
    $region6: #{tpu_custom_call.1} parent=1 // pred_check
      _
    $region7: #{tpu_custom_call.1} parent=1 // pred_check_branch
      %12 = sbr.rel (0) target = $region9
    $region8: #{tpu_custom_call.1} parent=1 // pred_region
      %s14 = ssub.s32 2048, 2048
      %15 = vsyncadd [#allocation3], %s14
      %s16 = sshll.u32 [#allocation2], 4
      %s17 = int_to_ptr.vmem [resolvable:$true] %s16
      %22 = dma.hbm_to_vmem [thread:$0]  %s1, 2048, %s17, [#allocation3], 128, 128, 8
    $region9: #{tpu_custom_call.1} parent=1 // pred_fallthru
      _
    // Predicated region
    $region10: #{tpu_custom_call.1} parent=1 // pred_check
      _
    $region11: #{tpu_custom_call.1} parent=1 // pred_check_branch
      %24 = sbr.rel (0) target = $region13
    $region12: #{tpu_custom_call.1} parent=1 // pred_region
      %25 = dma.done [#allocation3], 2048
    $region13: #{tpu_custom_call.1} parent=1 // pred_fallthru
      _
    %v26 = vld [vmem:[%s0] sm:$0xff]
    %v27 = vld [vmem:[%s0 + $0x8] sm:$0xff]
    %v28 = vlaneseq
    %v29 = vand.u32 %v28, 127
    %30 = vset.pattern.permute.xlu0 0
    %31 = vperm.xlu0 %30, %v26
    %v32 = vpop.permute.xlu0 %31
    %33 = vset.pattern.permute.xlu0 0
    %34 = vperm.xlu0 %33, %v27
    %v35 = vpop.permute.xlu0 %34
    %vm36 = vcmp.eq.s32.totalorder %v29, %v32
    %vm37 = vcmp.eq.s32.totalorder %v29, %v35
    %v38 = vsel %vm36, 1, 0
    %v39 = vsel %vm37, 1, 0
    %v40 = vcvt.s32.f32 %v38
    %v41 = vcvt.s32.f32 %v39
    %v42 = vld [vmem:[#allocation2] sm:$0xff]
    %v43 = vld [vmem:[#allocation2 + $0x8] sm:$0xff]
    %v44 = vld [vmem:[#allocation2 + $0x10] sm:$0xff]
    %v45 = vld [vmem:[#allocation2 + $0x18] sm:$0xff]
    %v46 = vld [vmem:[#allocation2 + $0x20] sm:$0xff]
    %v47 = vld [vmem:[#allocation2 + $0x28] sm:$0xff]
    %v48 = vld [vmem:[#allocation2 + $0x30] sm:$0xff]
    %v49 = vld [vmem:[#allocation2 + $0x38] sm:$0xff]
    %v50 = vld [vmem:[#allocation2 + $0x40] sm:$0xff]
    %v51 = vld [vmem:[#allocation2 + $0x48] sm:$0xff]
    %v52 = vld [vmem:[#allocation2 + $0x50] sm:$0xff]
    %v53 = vld [vmem:[#allocation2 + $0x58] sm:$0xff]
    %v54 = vld [vmem:[#allocation2 + $0x60] sm:$0xff]
    %v55 = vld [vmem:[#allocation2 + $0x68] sm:$0xff]
    %v56 = vld [vmem:[#allocation2 + $0x70] sm:$0xff]
    %v57 = vld [vmem:[#allocation2 + $0x78] sm:$0xff]
    %58 = vmatprep.subr.mxu0 0.0
    %59 = vmatpush1.msra.mxu0 %v42
    %60 = vmatprep.subr.mxu0 0.0
    %61 = vmatpush1.msra.mxu0 %v43
    %62 = vmatprep.subr.mxu0 0.0
    %63 = vmatpush1.msra.mxu0 %v44
    %64 = vmatprep.subr.mxu0 0.0
    %65 = vmatpush1.msra.mxu0 %v45
    %66 = vmatprep.subr.mxu0 0.0
    %67 = vmatpush1.msra.mxu0 %v46
    %68 = vmatprep.subr.mxu0 0.0
    %69 = vmatpush1.msra.mxu0 %v47
    %70 = vmatprep.subr.mxu0 0.0
    %71 = vmatpush1.msra.mxu0 %v48
    %72 = vmatprep.subr.mxu0 0.0
    %73 = vmatpush1.msra.mxu0 %v49
    %74 = vmatprep.subr.mxu0 0.0
    %75 = vmatpush1.msra.mxu0 %v50
    %76 = vmatprep.subr.mxu0 0.0
    %77 = vmatpush1.msra.mxu0 %v51
    %78 = vmatprep.subr.mxu0 0.0
    %79 = vmatpush1.msra.mxu0 %v52
    %80 = vmatprep.subr.mxu0 0.0
    %81 = vmatpush1.msra.mxu0 %v53
    %82 = vmatprep.subr.mxu0 0.0
    %83 = vmatpush1.msra.mxu0 %v54
    %84 = vmatprep.subr.mxu0 0.0
    %85 = vmatpush1.msra.mxu0 %v55
    %86 = vmatprep.subr.mxu0 0.0
    %87 = vmatpush1.msra.mxu0 %v56
    %88 = vmatprep.subr.mxu0 0.0
    %89 = vmatpush1.msra.mxu0 %v57
    %90 = vmatprep.subr.mxu0 0.0
    %91 = vmatpush1.msra.mxu0 0.0
    %92 = vmatprep.subr.mxu0 0.0
    %93 = vmatpush1.msra.mxu0 0.0
    %94 = vmatprep.subr.mxu0 0.0
    %95 = vmatpush1.msra.mxu0 0.0
    %96 = vmatprep.subr.mxu0 0.0
    %97 = vmatpush1.msra.mxu0 0.0
    %98 = vmatprep.subr.mxu0 0.0
    %99 = vmatpush1.msra.mxu0 0.0
    %100 = vmatprep.subr.mxu0 0.0
    %101 = vmatpush1.msra.mxu0 0.0
    %102 = vmatprep.subr.mxu0 0.0
    %103 = vmatpush1.msra.mxu0 0.0
    %104 = vmatprep.subr.mxu0 0.0
    %105 = vmatpush1.msra.mxu0 0.0
    %106 = vmatprep.subr.mxu0 0.0
    %107 = vmatpush1.msra.mxu0 0.0
    %108 = vmatprep.subr.mxu0 0.0
    %109 = vmatpush1.msra.mxu0 0.0
    %110 = vmatprep.subr.mxu0 0.0
    %111 = vmatpush1.msra.mxu0 0.0
    %112 = vmatprep.subr.mxu0 0.0
    %113 = vmatpush1.msra.mxu0 0.0
    %114 = vmatprep.subr.mxu0 0.0
    %115 = vmatpush1.msra.mxu0 0.0
    %116 = vmatprep.subr.mxu0 0.0
    %117 = vmatpush1.msra.mxu0 0.0
    %118 = vmatprep.subr.mxu0 0.0
    %119 = vmatpush1.msra.mxu0 0.0
    %120 = vmatprep.subr.mxu0 0.0
    %121 = vmatpush1.msra.mxu0 0.0
    %122 = vmatprep.mubr.f32.mxu0 0.0
    %123 = vmatmul.mubr.f32.gmra.mrb[0].mxu0 %v40
    %v124 = vpop.f32.mrb[0].mxu0
    %v125 = vadd.f32 0.0, %v124
    %v126 = vpop.f32.mrb[0].mxu0
    %127 = vmatprep.mubr.f32.mxu0 0.0
    %128 = vmatmul.mubr.f32.gmra.mrb[0].mxu0 %v41
    %v129 = vpop.f32.mrb[0].mxu0
    %v130 = vadd.f32 0.0, %v129
    %v131 = vpop.f32.mrb[0].mxu0
    %132 = vdwg.mxu0
    %v133 = vmul.f32 %v125, 11.313708
    %v134 = vmul.f32 %v130, 11.313708
    %135 = vst [vmem:[#allocation5] sm:$0xff] %v133
    %136 = vst [vmem:[#allocation5 + $0x8] sm:$0xff] %v134
    // Predicated region
    $region14: #{tpu_custom_call.1} parent=1 // pred_check
      _
    $region15: #{tpu_custom_call.1} parent=1 // pred_check_branch
      %138 = sbr.rel (0) target = $region17
    $region16: #{tpu_custom_call.1} parent=1 // pred_region
      %s140 = ssub.s32 256, 256
      %141 = vsyncadd [#allocation4], %s140
      %s142 = sshll.u32 [#allocation5], 4
      %s143 = int_to_ptr.vmem [resolvable:$true] %s142
      %148 = dma.vmem_to_hbm [thread:$0]  %s143, 256, %s2, [#allocation4], 128, 128, 8
    $region17: #{tpu_custom_call.1} parent=1 // pred_fallthru
      _
    // Predicated region
    $region18: #{tpu_custom_call.1} parent=1 // pred_check
      _
    $region19: #{tpu_custom_call.1} parent=1 // pred_check_branch
      %150 = sbr.rel (0) target = $region21
    $region20: #{tpu_custom_call.1} parent=1 // pred_region
      %151 = dma.done [#allocation4], 256
    $region21: #{tpu_custom_call.1} parent=1 // pred_fallthru
      _
    %152 = vsyncpa [#allocation3], 1
    %153 = vsyncpa [#allocation4], 1

</llo_original>
